<compile_context>
chip_gen: v7x
topology: tpu7x:2x2x1
jax: 0.10.0
libtpu: 0.0.40
codegen_flags: <defaults>
</compile_context>

<pallas_src>
from functools import partial

import jax
import jax.numpy as jnp
from jax.experimental import pallas as pl
from jax.experimental.pallas import tpu as pltpu

EPS = 1e-5


def down_kernel(x2_ref, w1_ref, w2_ref, g_ref, beta_ref, o_ref, *, seg_len):
    """x2_ref: (2, C_in, N*Lp) even/odd deinterleaved input
       w1_ref: (C_out, 3*C_in) tap-stacked conv1 weights
       w2_ref: (C_out, 3*C_out) tap-stacked conv2 weights
       g_ref, beta_ref: (C_out, 1) shared BN affine params
       o_ref: (C_out, N*Lp) output slab
       seg_len: Lp (pooled length of ONE batch element; static)"""
    C_out, NLp = o_ref.shape
    Lp = seg_len

    gamma = g_ref[...]                     # (C_out, 1)
    beta = beta_ref[...]                   # (C_out, 1)

    # Batch-boundary masks for the +-1 lane shifts (batch is folded into lanes).
    lane = jax.lax.broadcasted_iota(jnp.int32, (1, NLp), 1)
    pos = lane % Lp
    not_first = pos != 0                   # lane l has a valid l-1 neighbor
    not_last = pos != (Lp - 1)             # lane l has a valid l+1 neighbor

    def conv3(h, w_stacked):
        # h: (C, NLp); w_stacked: (C_out, 3C) with layout [tap0|tap1|tap2] over C.
        # y[o,l] = sum_c w[o,c,0]*h[c,l-1] + w[o,c,1]*h[c,l] + w[o,c,2]*h[c,l+1]
        h_m1 = jnp.where(not_first, pltpu.roll(h, shift=1, axis=1), 0.0)
        h_p1 = jnp.where(not_last, pltpu.roll(h, shift=NLp - 1, axis=1), 0.0)
        hs = jnp.concatenate([h_m1, h, h_p1], axis=0)          # (3C, NLp)
        return jnp.dot(w_stacked, hs, preferred_element_type=jnp.float32)

    def bn_relu(y):
        # Training-mode BatchNorm1d over (N, L) == lane axis of the folded slab.
        mean = jnp.mean(y, axis=1, keepdims=True)               # (C_out, 1)
        d = y - mean
        var = jnp.mean(d * d, axis=1, keepdims=True)            # biased variance
        scale = gamma * jax.lax.rsqrt(var + EPS)
        return jnp.maximum(d * scale + beta, 0.0)

    # MaxPool1d(2, 2): max over the even/odd deinterleaved copies.
    pooled = jnp.maximum(x2_ref[0], x2_ref[1])                  # (C_in, NLp)

    h1 = bn_relu(conv3(pooled, w1_ref[...]))                    # (C_out, NLp)
    h2 = bn_relu(conv3(h1, w2_ref[...]))                        # (C_out, NLp)
    o_ref[...] = h2.astype(o_ref.dtype)


def down_forward(x, w1, b1, w2, b2, gamma, beta):
    """x: (N, C_in, L); w1: (C_out, C_in, 3); w2: (C_out, C_out, 3).
    b1/b2 are accepted for interface parity but are mathematically cancelled by the
    training-mode BatchNorm that immediately follows each conv, so they are not
    passed into the kernel."""
    N, C_in, L = x.shape
    C_out = w1.shape[0]
    Lp = L // 2
    NLp = N * Lp

    # Even/odd deinterleave + fold batch into lanes: x2[p, c, n*Lp + j] = x[n, c, 2j + p]
    x2 = (x.astype(jnp.float32)
            .reshape(N, C_in, Lp, 2)      # [n, c, j, p]
            .transpose(3, 1, 0, 2)        # [p, c, n, j]
            .reshape(2, C_in, NLp))

    # Tap-stacked, lane-dense weights: w_s[o, t*C + c] = w[o, c, t]
    w1s = w1.astype(jnp.float32).transpose(0, 2, 1).reshape(C_out, 3 * C_in)
    w2s = w2.astype(jnp.float32).transpose(0, 2, 1).reshape(C_out, 3 * C_out)

    vmem = pl.BlockSpec(memory_space=pltpu.MemorySpace.VMEM)
    out = pl.pallas_call(
        partial(down_kernel, seg_len=Lp),
        out_shape=jax.ShapeDtypeStruct((C_out, NLp), jnp.float32),
        in_specs=[vmem] * 5,
        out_specs=vmem,
    )(
        x2,
        w1s,
        w2s,
        gamma.reshape(C_out, 1).astype(jnp.float32),
        beta.reshape(C_out, 1).astype(jnp.float32),
    )
    # (C_out, N*Lp) -> (N, C_out, Lp)
    return out.reshape(C_out, N, Lp).transpose(1, 0, 2)


def ref_forward(x, w1, b1, w2, b2, gamma, beta):
    """Pure-JAX reference with identical (training-mode) semantics, biases included."""
    N, C, L = x.shape
    xp = jnp.max(x.reshape(N, C, L // 2, 2), axis=-1)

    def conv(h, w, b):
        y = jax.lax.conv_general_dilated(
            h, w, window_strides=(1,), padding=((1, 1),),
            dimension_numbers=("NCH", "OIH", "NCH"))
        return y + b[None, :, None]

    def bn_relu(h):
        m = h.mean(axis=(0, 2), keepdims=True)
        v = h.var(axis=(0, 2), keepdims=True)      # biased variance
        hn = (h - m) * jax.lax.rsqrt(v + EPS)
        hn = hn * gamma[None, :, None] + beta[None, :, None]
        return jax.nn.relu(hn)

    h = bn_relu(conv(xp, w1, b1))
    h = bn_relu(conv(h, w2, b2))
    return h


if __name__ == "__main__":
    key = jax.random.PRNGKey(0)
    k = jax.random.split(key, 8)

    # Down(In=4, Out=8); N*(L//2) = 128 -> exactly lane-dense slabs.
    N, C_in, C_out, L = 4, 4, 8, 64

    x = jax.random.normal(k[0], (N, C_in, L), jnp.float32)
    w1 = 0.1 * jax.random.normal(k[1], (C_out, C_in, 3), jnp.float32)
    b1 = 0.1 * jax.random.normal(k[2], (C_out,), jnp.float32)
    w2 = 0.1 * jax.random.normal(k[3], (C_out, C_out, 3), jnp.float32)
    b2 = 0.1 * jax.random.normal(k[4], (C_out,), jnp.float32)
    gamma = 1.0 + 0.1 * jax.random.normal(k[5], (C_out,), jnp.float32)
    beta = 0.1 * jax.random.normal(k[6], (C_out,), jnp.float32)

    out = down_forward(x, w1, b1, w2, b2, gamma, beta)
    out = jax.block_until_ready(out)

    ref = ref_forward(x, w1, b1, w2, b2, gamma, beta)
    assert out.shape == (N, C_out, L // 2), out.shape
    assert jnp.allclose(out, ref, atol=1e-4, rtol=1e-4), float(jnp.max(jnp.abs(out - ref)))

    print("KERNEL_OK")
</pallas_src>

<mosaic_0001>
module attributes {stable_mosaic.version = 11 : i64} {
  func.func @down_kernel(%arg0: memref<2x4x128xf32, #tpu.memory_space<vmem>>, %arg1: memref<8x12xf32, #tpu.memory_space<vmem>>, %arg2: memref<8x24xf32, #tpu.memory_space<vmem>>, %arg3: memref<8x1xf32, #tpu.memory_space<vmem>>, %arg4: memref<8x1xf32, #tpu.memory_space<vmem>>, %arg5: memref<8x128xf32, #tpu.memory_space<vmem>>) attributes {dimension_semantics = [], scalar_prefetch = 0 : i64, scratch_operands = 0 : i64, tpu.core_type = #tpu.core_type<tc>} {
    %c0 = arith.constant 0 : index
    %c0_0 = arith.constant 0 : index
    %0 = vector.load %arg3[%c0, %c0_0] : memref<8x1xf32, #tpu.memory_space<vmem>>, vector<8x1xf32>
    %c0_1 = arith.constant 0 : index
    %c0_2 = arith.constant 0 : index
    %1 = vector.load %arg4[%c0_1, %c0_2] : memref<8x1xf32, #tpu.memory_space<vmem>>, vector<8x1xf32>
    %2 = tpu.iota {dimensions = array<i32: 1>} : vector<1x128xi32>
    %c32_i32 = arith.constant 32 : i32
    %c0_i32 = arith.constant 0 : i32
    %3 = arith.cmpi eq, %c32_i32, %c0_i32 : i32
    %c1_i32 = arith.constant 1 : i32
    %4 = arith.select %3, %c1_i32, %c32_i32 : i32
    %5 = vector.broadcast %4 : i32 to vector<1x128xi32>
    %6 = arith.remsi %2, %5 : vector<1x128xi32>
    %c0_i32_3 = arith.constant 0 : i32
    %7 = vector.broadcast %c0_i32_3 : i32 to vector<1x128xi32>
    %8 = arith.cmpi ne, %6, %7 : vector<1x128xi32>
    %c0_i32_4 = arith.constant 0 : i32
    %9 = vector.broadcast %c0_i32_4 : i32 to vector<1x128xi32>
    %10 = arith.cmpi slt, %6, %9 : vector<1x128xi32>
    %c0_i32_5 = arith.constant 0 : i32
    %11 = arith.cmpi slt, %4, %c0_i32_5 : i32
    %12 = vector.broadcast %11 : i1 to vector<1x128xi1>
    %13 = vector.broadcast %12 : vector<1x128xi1> to vector<1x128xi1>
    %14 = arith.xori %10, %13 : vector<1x128xi1>
    %15 = arith.andi %14, %8 : vector<1x128xi1>
    %16 = vector.broadcast %4 : i32 to vector<1x128xi32>
    %17 = arith.addi %6, %16 : vector<1x128xi32>
    %18 = arith.select %15, %17, %6 : vector<1x128xi1>, vector<1x128xi32>
    %c0_i32_6 = arith.constant 0 : i32
    %19 = vector.broadcast %c0_i32_6 : i32 to vector<1x128xi32>
    %20 = arith.cmpi ne, %18, %19 : vector<1x128xi32>
    %c31_i32 = arith.constant 31 : i32
    %21 = vector.broadcast %c31_i32 : i32 to vector<1x128xi32>
    %22 = arith.cmpi ne, %18, %21 : vector<1x128xi32>
    %c0_7 = arith.constant 0 : index
    %c0_8 = arith.constant 0 : index
    %c0_9 = arith.constant 0 : index
    %23 = vector.load %arg0[%c0_7, %c0_8, %c0_9] : memref<2x4x128xf32, #tpu.memory_space<vmem>>, vector<1x4x128xf32>
    %24 = vector.shape_cast %23 : vector<1x4x128xf32> to vector<4x128xf32>
    %c1 = arith.constant 1 : index
    %c0_10 = arith.constant 0 : index
    %c0_11 = arith.constant 0 : index
    %25 = vector.load %arg0[%c1, %c0_10, %c0_11] : memref<2x4x128xf32, #tpu.memory_space<vmem>>, vector<1x4x128xf32>
    %26 = vector.shape_cast %25 : vector<1x4x128xf32> to vector<4x128xf32>
    %27 = arith.maximumf %24, %26 : vector<4x128xf32>
    %c0_12 = arith.constant 0 : index
    %c0_13 = arith.constant 0 : index
    %28 = vector.load %arg1[%c0_12, %c0_13] : memref<8x12xf32, #tpu.memory_space<vmem>>, vector<8x12xf32>
    %c1_i32_14 = arith.constant 1 : i32
    %29 = tpu.dynamic_rotate %27 by %c1_i32_14 dim 1 : vector<4x128xf32>, i32 -> vector<4x128xf32>
    %cst = arith.constant 0.000000e+00 : f32
    %30 = vector.shape_cast %20 : vector<1x128xi1> to vector<1x128xi1>
    %31 = vector.broadcast %30 : vector<1x128xi1> to vector<4x128xi1>
    %32 = vector.broadcast %cst : f32 to vector<4x128xf32>
    %33 = arith.select %31, %29, %32 : vector<4x128xi1>, vector<4x128xf32>
    %c127_i32 = arith.constant 127 : i32
    %34 = tpu.dynamic_rotate %27 by %c127_i32 dim 1 : vector<4x128xf32>, i32 -> vector<4x128xf32>
    %cst_15 = arith.constant 0.000000e+00 : f32
    %35 = vector.shape_cast %22 : vector<1x128xi1> to vector<1x128xi1>
    %36 = vector.broadcast %35 : vector<1x128xi1> to vector<4x128xi1>
    %37 = vector.broadcast %cst_15 : f32 to vector<4x128xf32>
    %38 = arith.select %36, %34, %37 : vector<4x128xi1>, vector<4x128xf32>
    %39 = tpu.concatenate %33, %27, %38 in 0 : vector<4x128xf32>, vector<4x128xf32>, vector<4x128xf32> -> vector<12x128xf32>
    %cst_16 = arith.constant dense<0.000000e+00> : vector<8x128xf32>
    %40 = tpu.matmul %28, %39, %cst_16 {dimension_numbers = #tpu.dot_dimension_numbers<[1], [0], [0], [1], [0, 0, 1, 1], [], []>} : vector<8x12xf32>, vector<12x128xf32>, vector<8x128xf32> -> vector<8x128xf32>
    %cst_17 = arith.constant dense<0.000000e+00> : vector<8xf32>
    %41 = vector.multi_reduction <add>, %40, %cst_17 [1] : vector<8x128xf32> to vector<8xf32>
    %42 = vector.shape_cast %41 : vector<8xf32> to vector<8x1xf32>
    %cst_18 = arith.constant 1.280000e+02 : f32
    %43 = vector.broadcast %cst_18 : f32 to vector<8x1xf32>
    %44 = arith.divf %42, %43 : vector<8x1xf32>
    %45 = vector.broadcast %44 : vector<8x1xf32> to vector<8x128xf32>
    %46 = arith.subf %40, %45 : vector<8x128xf32>
    %47 = arith.mulf %46, %46 : vector<8x128xf32>
    %cst_19 = arith.constant dense<0.000000e+00> : vector<8xf32>
    %48 = vector.multi_reduction <add>, %47, %cst_19 [1] : vector<8x128xf32> to vector<8xf32>
    %49 = vector.shape_cast %48 : vector<8xf32> to vector<8x1xf32>
    %cst_20 = arith.constant 1.280000e+02 : f32
    %50 = vector.broadcast %cst_20 : f32 to vector<8x1xf32>
    %51 = arith.divf %49, %50 : vector<8x1xf32>
    %cst_21 = arith.constant 9.99999974E-6 : f32
    %52 = vector.broadcast %cst_21 : f32 to vector<8x1xf32>
    %53 = arith.addf %51, %52 : vector<8x1xf32>
    %54 = math.rsqrt %53 : vector<8x1xf32>
    %55 = arith.mulf %0, %54 : vector<8x1xf32>
    %56 = vector.broadcast %55 : vector<8x1xf32> to vector<8x128xf32>
    %57 = arith.mulf %46, %56 : vector<8x128xf32>
    %58 = vector.broadcast %1 : vector<8x1xf32> to vector<8x128xf32>
    %59 = arith.addf %57, %58 : vector<8x128xf32>
    %cst_22 = arith.constant 0.000000e+00 : f32
    %60 = vector.broadcast %cst_22 : f32 to vector<8x128xf32>
    %61 = arith.maximumf %59, %60 : vector<8x128xf32>
    %c0_23 = arith.constant 0 : index
    %c0_24 = arith.constant 0 : index
    %62 = vector.load %arg2[%c0_23, %c0_24] : memref<8x24xf32, #tpu.memory_space<vmem>>, vector<8x24xf32>
    %c1_i32_25 = arith.constant 1 : i32
    %63 = tpu.dynamic_rotate %61 by %c1_i32_25 dim 1 : vector<8x128xf32>, i32 -> vector<8x128xf32>
    %cst_26 = arith.constant 0.000000e+00 : f32
    %64 = vector.shape_cast %20 : vector<1x128xi1> to vector<1x128xi1>
    %65 = vector.broadcast %64 : vector<1x128xi1> to vector<8x128xi1>
    %66 = vector.broadcast %cst_26 : f32 to vector<8x128xf32>
    %67 = arith.select %65, %63, %66 : vector<8x128xi1>, vector<8x128xf32>
    %c127_i32_27 = arith.constant 127 : i32
    %68 = tpu.dynamic_rotate %61 by %c127_i32_27 dim 1 : vector<8x128xf32>, i32 -> vector<8x128xf32>
    %cst_28 = arith.constant 0.000000e+00 : f32
    %69 = vector.shape_cast %22 : vector<1x128xi1> to vector<1x128xi1>
    %70 = vector.broadcast %69 : vector<1x128xi1> to vector<8x128xi1>
    %71 = vector.broadcast %cst_28 : f32 to vector<8x128xf32>
    %72 = arith.select %70, %68, %71 : vector<8x128xi1>, vector<8x128xf32>
    %73 = tpu.concatenate %67, %61, %72 in 0 : vector<8x128xf32>, vector<8x128xf32>, vector<8x128xf32> -> vector<24x128xf32>
    %cst_29 = arith.constant dense<0.000000e+00> : vector<8x128xf32>
    %74 = tpu.matmul %62, %73, %cst_29 {dimension_numbers = #tpu.dot_dimension_numbers<[1], [0], [0], [1], [0, 0, 1, 1], [], []>} : vector<8x24xf32>, vector<24x128xf32>, vector<8x128xf32> -> vector<8x128xf32>
    %cst_30 = arith.constant dense<0.000000e+00> : vector<8xf32>
    %75 = vector.multi_reduction <add>, %74, %cst_30 [1] : vector<8x128xf32> to vector<8xf32>
    %76 = vector.shape_cast %75 : vector<8xf32> to vector<8x1xf32>
    %cst_31 = arith.constant 1.280000e+02 : f32
    %77 = vector.broadcast %cst_31 : f32 to vector<8x1xf32>
    %78 = arith.divf %76, %77 : vector<8x1xf32>
    %79 = vector.broadcast %78 : vector<8x1xf32> to vector<8x128xf32>
    %80 = arith.subf %74, %79 : vector<8x128xf32>
    %81 = arith.mulf %80, %80 : vector<8x128xf32>
    %cst_32 = arith.constant dense<0.000000e+00> : vector<8xf32>
    %82 = vector.multi_reduction <add>, %81, %cst_32 [1] : vector<8x128xf32> to vector<8xf32>
    %83 = vector.shape_cast %82 : vector<8xf32> to vector<8x1xf32>
    %cst_33 = arith.constant 1.280000e+02 : f32
    %84 = vector.broadcast %cst_33 : f32 to vector<8x1xf32>
    %85 = arith.divf %83, %84 : vector<8x1xf32>
    %cst_34 = arith.constant 9.99999974E-6 : f32
    %86 = vector.broadcast %cst_34 : f32 to vector<8x1xf32>
    %87 = arith.addf %85, %86 : vector<8x1xf32>
    %88 = math.rsqrt %87 : vector<8x1xf32>
    %89 = arith.mulf %0, %88 : vector<8x1xf32>
    %90 = vector.broadcast %89 : vector<8x1xf32> to vector<8x128xf32>
    %91 = arith.mulf %80, %90 : vector<8x128xf32>
    %92 = vector.broadcast %1 : vector<8x1xf32> to vector<8x128xf32>
    %93 = arith.addf %91, %92 : vector<8x128xf32>
    %cst_35 = arith.constant 0.000000e+00 : f32
    %94 = vector.broadcast %cst_35 : f32 to vector<8x128xf32>
    %95 = arith.maximumf %93, %94 : vector<8x128xf32>
    %c0_36 = arith.constant 0 : index
    %c0_37 = arith.constant 0 : index
    %96 = vector.load %arg5[%c0_36, %c0_37] : memref<8x128xf32, #tpu.memory_space<vmem>>, vector<8x128xf32>
    tpu.vector_store %arg5[%c0_36, %c0_37], %95 {strides = array<i32>} : memref<8x128xf32, #tpu.memory_space<vmem>>, vector<8x128xf32>,
    return
  }
}

</mosaic_0001>

<llo_original>
// kernel: tpu_custom_call.1
$region0: #{tpu_custom_call.1}
  #allocation0 [shape = 'u32[]', space=smem, size = 0x4, offset = 0x4, fixed_abs, tag = 'smem constant byte address 0x4 - core index']
  #allocation1 [shape = 'u32[144,128]{1,0:T(1,128)}', space=vmem, size = 0x12000, scoped, tag = 'internal scratch']
  %s0 = inlined_call_operand.vmem [shape: f32[2,4,128], index: 0, kind: input, shape index: {}]
  %s1 = inlined_call_operand.vmem [shape: f32[8,12], index: 1, kind: input, shape index: {}]
  %s2 = inlined_call_operand.vmem [shape: f32[8,24], index: 2, kind: input, shape index: {}]
  %s3 = inlined_call_operand.vmem [shape: f32[8,1], index: 3, kind: input, shape index: {}]
  %s4 = inlined_call_operand.vmem [shape: f32[8,1], index: 4, kind: input, shape index: {}]
  %s5 = inlined_call_operand.hbm [shape: f32[8,128], index: 5, kind: output, shape index: {}]
  %s6 = sld [smem:[#allocation0]]
  $region30: #{tpu_custom_call.1} parent=0
    _
  %s8 = ssub.s32 1, %s6
  %s9 = scalar_select 0, %s8, %s6
  $region1: #{tpu_custom_call.1} parent=0
    #allocation2 [shape = 'u8[4096]{0}', space=vmem, size = 0x1000, scoped, tag = 'output window, operand 0, single buffered']
    #allocation3 [shape = 's32[1]{0}', space=sflag, size = 0x4, scoped, tag = 'scoped memory for tpu_custom_call.1']
    %10 = vsyncpa [#allocation3], 0
    // Predicated region
    $region2: #{tpu_custom_call.1} parent=1 // pred_check
      _
    $region3: #{tpu_custom_call.1} parent=1 // pred_check_branch
      %12 = sbr.rel (0) target = $region5
    $region4: #{tpu_custom_call.1} parent=1 // pred_region
      _
    $region5: #{tpu_custom_call.1} parent=1 // pred_fallthru
      _
    // Predicated region
    $region6: #{tpu_custom_call.1} parent=1 // pred_check
      _
    $region7: #{tpu_custom_call.1} parent=1 // pred_check_branch
      %14 = sbr.rel (0) target = $region9
    $region8: #{tpu_custom_call.1} parent=1 // pred_region
      _
    $region9: #{tpu_custom_call.1} parent=1 // pred_fallthru
      _
    // Predicated region
    $region10: #{tpu_custom_call.1} parent=1 // pred_check
      _
    $region11: #{tpu_custom_call.1} parent=1 // pred_check_branch
      %16 = sbr.rel (0) target = $region13
    $region12: #{tpu_custom_call.1} parent=1 // pred_region
      _
    $region13: #{tpu_custom_call.1} parent=1 // pred_fallthru
      _
    // Predicated region
    $region14: #{tpu_custom_call.1} parent=1 // pred_check
      _
    $region15: #{tpu_custom_call.1} parent=1 // pred_check_branch
      %18 = sbr.rel (0) target = $region17
    $region16: #{tpu_custom_call.1} parent=1 // pred_region
      _
    $region17: #{tpu_custom_call.1} parent=1 // pred_fallthru
      _
    // Predicated region
    $region18: #{tpu_custom_call.1} parent=1 // pred_check
      _
    $region19: #{tpu_custom_call.1} parent=1 // pred_check_branch
      %20 = sbr.rel (0) target = $region21
    $region20: #{tpu_custom_call.1} parent=1 // pred_region
      _
    $region21: #{tpu_custom_call.1} parent=1 // pred_fallthru
      _
    %v21 = vld [vmem:[%s3] sm:$0xff]
    %v22 = vld [vmem:[%s4] sm:$0xff]
    %v23 = vlaneseq
    %v24 = vand.u32 %v23, 127
    %vm25 = vcmp.lt.s32.totalorder %v24, 0
    %v26 = vsub.s32 0, %v24
    %v27 = vsel %vm25, %v26, %v24
    %v28 = vshrl.u32 %v27, 5
    %v29 = vand.u32 %v27, 31
    %v30 = vsub.s32 0, %v29
    %v31 = vsel %vm25, %v30, %v29
    %vm32 = vcmp.ne.s32.totalorder %v31, 0
    %vm33 = vcmp.lt.s32.totalorder %v31, 0
    %vm34 = vmand %vm33, %vm32
    %v35 = vadd.s32 %v31, 32
    %v36 = vsel %vm34, %v35, %v31
    %vm37 = vcmp.ne.s32.totalorder %v36, 0
    %vm38 = vcmp.ne.s32.totalorder %v36, 31
    %v39 = vld [vmem:[%s0] sm:$0xf]
    %s40 = scalar_lea.vmem %s0, 4
    %v41 = vld [vmem:[%s40] sm:$0xf]
    %v42 = vmax.f32 %v39, %v41
    %v43 = vld [vmem:[%s1] sm:$0xff]
    %44 = vrot.lane.b32.xlu0 %v42, 1
    %v45 = vpop.permute.xlu0 %44
    %v46 = vsel %vm37, 1, 0
    %vm47 = vcmp.eq.s32.totalorder %v46, 1
    %v48 = vsel %vm47, %v45, 0.0
    %49 = vrot.lane.b32.xlu0 %v42, 127
    %v50 = vpop.permute.xlu0 %49
    %v51 = vsel %vm38, 1, 0
    %vm52 = vcmp.eq.s32.totalorder %v51, 1
    %v53 = vsel %vm52, %v50, 0.0
    %v55 = vrot.slane %v42, 4
    %vm57 = vcmask 1043456
    %v58 = vsel %vm57, %v48, %v55
    %vm59 = vcmask 97280
    %v61 = vsel %vm59, %v43, 0
    %v64 = vsel %vm57, %v53, 0
    %66 = vmatprep.subr.mxu0 0.0
    %67 = vmatpush1.msra.mxu0 %v58
    %68 = vmatprep.subr.mxu0 0.0
    %69 = vmatpush1.msra.mxu0 %v64
    %70 = vmatprep.subr.mxu0 0.0
    %71 = vmatpush1.msra.mxu0 0.0
    %72 = vmatprep.subr.mxu0 0.0
    %73 = vmatpush1.msra.mxu0 0.0
    %74 = vmatprep.subr.mxu0 0.0
    %75 = vmatpush1.msra.mxu0 0.0
    %76 = vmatprep.subr.mxu0 0.0
    %77 = vmatpush1.msra.mxu0 0.0
    %78 = vmatprep.subr.mxu0 0.0
    %79 = vmatpush1.msra.mxu0 0.0
    %80 = vmatprep.subr.mxu0 0.0
    %81 = vmatpush1.msra.mxu0 0.0
    %82 = vmatprep.subr.mxu0 0.0
    %83 = vmatpush1.msra.mxu0 0.0
    %84 = vmatprep.subr.mxu0 0.0
    %85 = vmatpush1.msra.mxu0 0.0
    %86 = vmatprep.subr.mxu0 0.0
    %87 = vmatpush1.msra.mxu0 0.0
    %88 = vmatprep.subr.mxu0 0.0
    %89 = vmatpush1.msra.mxu0 0.0
    %90 = vmatprep.subr.mxu0 0.0
    %91 = vmatpush1.msra.mxu0 0.0
    %92 = vmatprep.subr.mxu0 0.0
    %93 = vmatpush1.msra.mxu0 0.0
    %94 = vmatprep.subr.mxu0 0.0
    %95 = vmatpush1.msra.mxu0 0.0
    %96 = vmatprep.subr.mxu0 0.0
    %97 = vmatpush1.msra.mxu0 0.0
    %98 = vmatprep.subr.mxu0 0.0
    %99 = vmatpush1.msra.mxu0 0.0
    %100 = vmatprep.subr.mxu0 0.0
    %101 = vmatpush1.msra.mxu0 0.0
    %102 = vmatprep.subr.mxu0 0.0
    %103 = vmatpush1.msra.mxu0 0.0
    %104 = vmatprep.subr.mxu0 0.0
    %105 = vmatpush1.msra.mxu0 0.0
    %106 = vmatprep.subr.mxu0 0.0
    %107 = vmatpush1.msra.mxu0 0.0
    %108 = vmatprep.subr.mxu0 0.0
    %109 = vmatpush1.msra.mxu0 0.0
    %110 = vmatprep.subr.mxu0 0.0
    %111 = vmatpush1.msra.mxu0 0.0
    %112 = vmatprep.subr.mxu0 0.0
    %113 = vmatpush1.msra.mxu0 0.0
    %114 = vmatprep.subr.mxu0 0.0
    %115 = vmatpush1.msra.mxu0 0.0
    %116 = vmatprep.subr.mxu0 0.0
    %117 = vmatpush1.msra.mxu0 0.0
    %118 = vmatprep.subr.mxu0 0.0
    %119 = vmatpush1.msra.mxu0 0.0
    %120 = vmatprep.subr.mxu0 0.0
    %121 = vmatpush1.msra.mxu0 0.0
    %122 = vmatprep.subr.mxu0 0.0
    %123 = vmatpush1.msra.mxu0 0.0
    %124 = vmatprep.subr.mxu0 0.0
    %125 = vmatpush1.msra.mxu0 0.0
    %126 = vmatprep.subr.mxu0 0.0
    %127 = vmatpush1.msra.mxu0 0.0
    %128 = vmatprep.subr.mxu0 0.0
    %129 = vmatpush1.msra.mxu0 0.0
    %130 = vmatprep.mubr.f32.mxu0 0.0
    %131 = vmatmul.mubr.f32.gmra.mrb[0].mxu0 %v61
    %v132 = vpop.f32.mrb[0].mxu0
    %v133 = vadd.f32 0.0, %v132
    %v134 = vpop.f32.mrb[0].mxu0
    %135 = vdwg.mxu0
    %136 = vadd.xlane.f32.xlu0 %v133
    %v137 = vpop.xlane.xlu0 %136
    %v138 = vrcp.pop 128.0
    %v139 = vmul.f32 %v137, %v138
    %v140 = vsub.f32 %v133, %v139
    %v141 = vmul.f32 %v140, %v140
    %142 = vadd.xlane.f32.xlu0 %v141
    %v143 = vpop.xlane.xlu0 %142
    %v144 = vmul.f32 %v143, %v138
    %v145 = vadd.f32 %v144, 1e-05
    %v146 = vrsqrt.pop %v145
    %v147 = vmul.f32 %v21, %v146
    %149 = vset.pattern.permute.xlu0 0
    %150 = vperm.xlu0 %149, %v147
    %v151 = vpop.permute.xlu0 %150
    %v153 = vmul.f32 %v140, %v151
    %155 = vset.pattern.permute.xlu0 0
    %156 = vperm.xlu0 %155, %v22
    %v157 = vpop.permute.xlu0 %156
    %v159 = vadd.f32 %v153, %v157
    %v160 = vmax.f32 %v159, 0.0
    %v161 = vld [vmem:[%s2] sm:$0xff]
    %162 = vrot.lane.b32.xlu0 %v160, 1
    %v163 = vpop.permute.xlu0 %162
    %v164 = vsel %vm47, %v163, 0.0
    %165 = vrot.lane.b32.xlu0 %v160, 127
    %v166 = vpop.permute.xlu0 %165
    %v167 = vsel %vm52, %v166, 0.0
    %vm168 = vcmask 195584
    %v170 = vsel %vm168, %v161, 0
    %172 = vmatprep.subr.mxu0 0.0
    %173 = vmatpush1.msra.mxu0 %v164
    %174 = vmatprep.subr.mxu0 0.0
    %175 = vmatpush1.msra.mxu0 %v160
    %176 = vmatprep.subr.mxu0 0.0
    %177 = vmatpush1.msra.mxu0 %v167
    %178 = vmatprep.subr.mxu0 0.0
    %179 = vmatpush1.msra.mxu0 0.0
    %180 = vmatprep.subr.mxu0 0.0
    %181 = vmatpush1.msra.mxu0 0.0
    %182 = vmatprep.subr.mxu0 0.0
    %183 = vmatpush1.msra.mxu0 0.0
    %184 = vmatprep.subr.mxu0 0.0
    %185 = vmatpush1.msra.mxu0 0.0
    %186 = vmatprep.subr.mxu0 0.0
    %187 = vmatpush1.msra.mxu0 0.0
    %188 = vmatprep.subr.mxu0 0.0
    %189 = vmatpush1.msra.mxu0 0.0
    %190 = vmatprep.subr.mxu0 0.0
    %191 = vmatpush1.msra.mxu0 0.0
    %192 = vmatprep.subr.mxu0 0.0
    %193 = vmatpush1.msra.mxu0 0.0
    %194 = vmatprep.subr.mxu0 0.0
    %195 = vmatpush1.msra.mxu0 0.0
    %196 = vmatprep.subr.mxu0 0.0
    %197 = vmatpush1.msra.mxu0 0.0
    %198 = vmatprep.subr.mxu0 0.0
    %199 = vmatpush1.msra.mxu0 0.0
    %200 = vmatprep.subr.mxu0 0.0
    %201 = vmatpush1.msra.mxu0 0.0
    %202 = vmatprep.subr.mxu0 0.0
    %203 = vmatpush1.msra.mxu0 0.0
    %204 = vmatprep.subr.mxu0 0.0
    %205 = vmatpush1.msra.mxu0 0.0
    %206 = vmatprep.subr.mxu0 0.0
    %207 = vmatpush1.msra.mxu0 0.0
    %208 = vmatprep.subr.mxu0 0.0
    %209 = vmatpush1.msra.mxu0 0.0
    %210 = vmatprep.subr.mxu0 0.0
    %211 = vmatpush1.msra.mxu0 0.0
    %212 = vmatprep.subr.mxu0 0.0
    %213 = vmatpush1.msra.mxu0 0.0
    %214 = vmatprep.subr.mxu0 0.0
    %215 = vmatpush1.msra.mxu0 0.0
    %216 = vmatprep.subr.mxu0 0.0
    %217 = vmatpush1.msra.mxu0 0.0
    %218 = vmatprep.subr.mxu0 0.0
    %219 = vmatpush1.msra.mxu0 0.0
    %220 = vmatprep.subr.mxu0 0.0
    %221 = vmatpush1.msra.mxu0 0.0
    %222 = vmatprep.subr.mxu0 0.0
    %223 = vmatpush1.msra.mxu0 0.0
    %224 = vmatprep.subr.mxu0 0.0
    %225 = vmatpush1.msra.mxu0 0.0
    %226 = vmatprep.subr.mxu0 0.0
    %227 = vmatpush1.msra.mxu0 0.0
    %228 = vmatprep.subr.mxu0 0.0
    %229 = vmatpush1.msra.mxu0 0.0
    %230 = vmatprep.subr.mxu0 0.0
    %231 = vmatpush1.msra.mxu0 0.0
    %232 = vmatprep.subr.mxu0 0.0
    %233 = vmatpush1.msra.mxu0 0.0
    %234 = vmatprep.subr.mxu0 0.0
    %235 = vmatpush1.msra.mxu0 0.0
    %236 = vmatprep.mubr.f32.mxu0 0.0
    %237 = vmatmul.mubr.f32.gmra.mrb[0].mxu0 %v170
    %v238 = vpop.f32.mrb[0].mxu0
    %v239 = vadd.f32 0.0, %v238
    %v240 = vpop.f32.mrb[0].mxu0
    %241 = vdwg.mxu0
    %242 = vadd.xlane.f32.xlu0 %v239
    %v243 = vpop.xlane.xlu0 %242
    %v244 = vmul.f32 %v243, %v138
    %v245 = vsub.f32 %v239, %v244
    %v246 = vmul.f32 %v245, %v245
    %247 = vadd.xlane.f32.xlu0 %v246
    %v248 = vpop.xlane.xlu0 %247
    %v249 = vmul.f32 %v248, %v138
    %v250 = vadd.f32 %v249, 1e-05
    %v251 = vrsqrt.pop %v250
    %v252 = vmul.f32 %v21, %v251
    %254 = vset.pattern.permute.xlu0 0
    %255 = vperm.xlu0 %254, %v252
    %v256 = vpop.permute.xlu0 %255
    %v258 = vmul.f32 %v245, %v256
    %v259 = vadd.f32 %v258, %v157
    %v260 = vmax.f32 %v259, 0.0
    %261 = vst [vmem:[#allocation2] sm:$0xff] %v260
    // Predicated region
    $region22: #{tpu_custom_call.1} parent=1 // pred_check
      _
    $region23: #{tpu_custom_call.1} parent=1 // pred_check_branch
      %263 = sbr.rel (0) target = $region25
    $region24: #{tpu_custom_call.1} parent=1 // pred_region
      %s265 = ssub.s32 128, 128
      %266 = vsyncadd [#allocation3], %s265
      %s268 = sshll.u32 [#allocation2], 4
      %s269 = int_to_ptr.vmem [resolvable:$true] %s268
      %271 = dma.vmem_to_hbm [thread:$0]  %s269, 128, %s5, [#allocation3]
    $region25: #{tpu_custom_call.1} parent=1 // pred_fallthru
      _
    // Predicated region
    $region26: #{tpu_custom_call.1} parent=1 // pred_check
      _
    $region27: #{tpu_custom_call.1} parent=1 // pred_check_branch
      %273 = sbr.rel (0) target = $region29
    $region28: #{tpu_custom_call.1} parent=1 // pred_region
      %274 = dma.done [#allocation3], 128
    $region29: #{tpu_custom_call.1} parent=1 // pred_fallthru
      _
    %275 = vsyncpa [#allocation3], 1

</llo_original>
